<compile_context>
chip_gen: v7x
topology: tpu7x:2x2x1
jax: 0.10.0
libtpu: 0.0.40
codegen_flags: <defaults>
</compile_context>

<pallas_src>
import jax
import jax.numpy as jnp
from jax.experimental import pallas as pl
from jax.experimental.pallas import tpu as pltpu

# Small, forward-consistent shapes.
B, C_IN, H, W = 2, 4, 16, 16          # input images (B, C, H, W)
FEAT = 32                             # stand-in for backbone.num_features (1024 in densenet121)
K1, K2 = 398, 146                     # clf / clf2 output dims (as in the module)
KTOT = K1 + K2                        # fused head output width
KH = KW = 3                           # stub conv kernel
KC = KH * KW * C_IN                   # conv contraction size (36)
KPAD = 40                             # padded contraction size (multiple of 8)
BHW = B * H * W                       # conv matmul N dim (512)
BW = B * W                            # head rows (32)


# ----------------------------------------------------------------------------
# Fused kernel: conv(matmul)+ReLU -> H-mean(matmul) -> Linear(s) -> W-pooling.
# ----------------------------------------------------------------------------
def fused_kernel(cols_ref, wc_ref, bc_ref, pool_ref, wh_ref, bh_ref, out_ref):
    # cols_ref: (KPAD, BHW)  bf16   im2col columns, col order (b, h, w)
    # wc_ref:   (FEAT, KPAD) bf16   flattened conv weights
    # bc_ref:   (FEAT, 1)    f32    conv bias
    # pool_ref: (BHW, BW)    f32    constant H-mean pooling matrix
    # wh_ref:   (FEAT, KTOT) bf16   [clf | clf2] weights
    # bh_ref:   (1, KTOT)    f32    [clf | clf2] biases
    # out_ref:  (B, KTOT)    f32

    # 3x3 same-conv as a single lane-dense matmul, bias + ReLU (bf16 in, f32 acc).
    feat = jnp.dot(wc_ref[...], cols_ref[...], preferred_element_type=jnp.float32)
    feat = jnp.maximum(feat + bc_ref[...], 0.0)                    # (FEAT, BHW)

    # mean over H (exact, f32) done lane-dense on (FEAT, BHW) via pooling matmul.
    m = jnp.dot(feat, pool_ref[...], preferred_element_type=jnp.float32)   # (FEAT, BW)

    # nn.Dropout is identity at inference time.
    # One tiny (FEAT, BW) = (32, 32) transpose, then the fused clf/clf2 matmul.
    m_t = jnp.transpose(m).astype(jnp.bfloat16)                    # (BW, FEAT)
    logits = jnp.dot(m_t, wh_ref[...], preferred_element_type=jnp.float32)
    logits = logits + bh_ref[...]                                  # (BW, KTOT)

    # Per-batch pooling over W: mean + 0.5 * max.
    rows = []
    for b in range(B):
        lb = logits[b * W:(b + 1) * W, :]                          # (W, KTOT)
        rows.append(jnp.mean(lb, axis=0, keepdims=True)
                    + 0.5 * jnp.max(lb, axis=0, keepdims=True))
    out_ref[...] = jnp.concatenate(rows, axis=0).astype(out_ref.dtype)   # (B, KTOT)


# ----------------------------------------------------------------------------
# Plain-JAX glue: im2col, constant pooling matrix, weight packing.
# ----------------------------------------------------------------------------
def _im2col(x):
    """x: (B, C_IN, H, W) -> (KPAD, B*H*W), row order (kh, kw, ci), col order (b, h, w)."""
    x_pad = jnp.pad(x, ((0, 0), (0, 0), (1, 1), (1, 1)))
    cols = []
    for kh in range(KH):
        for kw in range(KW):
            cols.append(x_pad[:, :, kh:kh + H, kw:kw + W].reshape(B, C_IN, H * W))
    im2col = jnp.concatenate(cols, axis=1)                          # (B, KC, H*W)
    im2col = jnp.transpose(im2col, (1, 0, 2)).reshape(KC, BHW)      # (KC, B*H*W)
    return jnp.pad(im2col, ((0, KPAD - KC), (0, 0)))                # (KPAD, B*H*W)


def _h_mean_pool_matrix():
    """(BHW, BW) matrix: column (b, w) averages rows (b, h, w) over h."""
    n = jnp.arange(BHW)
    j = jnp.arange(BW)
    same_b = (n[:, None] // (H * W)) == (j[None, :] // W)
    same_w = (n[:, None] % W) == (j[None, :] % W)
    return jnp.where(same_b & same_w, 1.0 / H, 0.0).astype(jnp.float32)


@jax.jit
def sed_attn_cnn1_forward(x, conv_w, conv_b, w1, b1, w2, b2):
    cols = _im2col(x).astype(jnp.bfloat16)
    w_mat = jnp.transpose(conv_w, (0, 2, 3, 1)).reshape(FEAT, KC)   # rows (kh, kw, ci)
    w_mat = jnp.pad(w_mat, ((0, 0), (0, KPAD - KC))).astype(jnp.bfloat16)
    b_mat = conv_b.reshape(FEAT, 1).astype(jnp.float32)
    pool = _h_mean_pool_matrix()
    w_cat = jnp.concatenate([w1, w2], axis=1).astype(jnp.bfloat16)  # (FEAT, KTOT)
    b_cat = jnp.concatenate([b1, b2]).reshape(1, KTOT).astype(jnp.float32)

    out = pl.pallas_call(
        fused_kernel,
        out_shape=jax.ShapeDtypeStruct((B, KTOT), jnp.float32),
        grid=(1,),
        in_specs=[
            pl.BlockSpec((KPAD, BHW), lambda i: (0, 0)),
            pl.BlockSpec((FEAT, KPAD), lambda i: (0, 0)),
            pl.BlockSpec((FEAT, 1), lambda i: (0, 0)),
            pl.BlockSpec((BHW, BW), lambda i: (0, 0)),
            pl.BlockSpec((FEAT, KTOT), lambda i: (0, 0)),
            pl.BlockSpec((1, KTOT), lambda i: (0, 0)),
        ],
        out_specs=pl.BlockSpec((B, KTOT), lambda i: (0, 0)),
        compiler_params=pltpu.CompilerParams(dimension_semantics=("arbitrary",)),
    )(cols, w_mat, b_mat, pool, w_cat, b_cat)

    return out[:, :K1], out[:, K1:]


# ----------------------------------------------------------------------------
# Pure-JAX f32 reference for validation.
# ----------------------------------------------------------------------------
def reference(x, conv_w, conv_b, w1, b1, w2, b2):
    feat = jax.lax.conv_general_dilated(
        x, conv_w, window_strides=(1, 1), padding="SAME",
        dimension_numbers=("NCHW", "OIHW", "NCHW"))
    feat = jnp.maximum(feat + conv_b.reshape(1, FEAT, 1, 1), 0.0)
    m = jnp.mean(feat, axis=2)                           # (B, C, W)
    xt = jnp.transpose(m, (0, 2, 1))                     # (B, W, C)
    x1 = xt @ w1 + b1.reshape(1, 1, K1)
    x2 = xt @ w2 + b2.reshape(1, 1, K2)
    o1 = jnp.mean(x1, axis=1) + 0.5 * jnp.max(x1, axis=1)
    o2 = jnp.mean(x2, axis=1) + 0.5 * jnp.max(x2, axis=1)
    return o1, o2


if __name__ == "__main__":
    key = jax.random.PRNGKey(0)
    kx, kcw, kcb, k1w, k1b, k2w, k2b = jax.random.split(key, 7)
    x = jax.random.normal(kx, (B, C_IN, H, W), jnp.float32)
    conv_w = jax.random.normal(kcw, (FEAT, C_IN, KH, KW), jnp.float32) * 0.1
    conv_b = jax.random.normal(kcb, (FEAT,), jnp.float32) * 0.1
    w1 = jax.random.normal(k1w, (FEAT, K1), jnp.float32) * 0.05
    b1 = jax.random.normal(k1b, (K1,), jnp.float32) * 0.05
    w2 = jax.random.normal(k2w, (FEAT, K2), jnp.float32) * 0.05
    b2 = jax.random.normal(k2b, (K2,), jnp.float32) * 0.05

    o1, o2 = sed_attn_cnn1_forward(x, conv_w, conv_b, w1, b1, w2, b2)
    jax.block_until_ready((o1, o2))

    r1, r2 = reference(x, conv_w, conv_b, w1, b1, w2, b2)
    assert o1.shape == (B, K1) and o2.shape == (B, K2)
    assert jnp.allclose(o1, r1, atol=3e-2, rtol=3e-2), "clf head mismatch"
    assert jnp.allclose(o2, r2, atol=3e-2, rtol=3e-2), "clf2 head mismatch"
    print("KERNEL_OK")
</pallas_src>

<mosaic_0001>
module attributes {stable_mosaic.version = 11 : i64} {
  func.func @fused_kernel(%arg0: i32, %arg1: memref<40x512xbf16, #tpu.memory_space<vmem>>, %arg2: memref<32x40xbf16, #tpu.memory_space<vmem>>, %arg3: memref<32x1xf32, #tpu.memory_space<vmem>>, %arg4: memref<512x32xf32, #tpu.memory_space<vmem>>, %arg5: memref<32x544xbf16, #tpu.memory_space<vmem>>, %arg6: memref<1x544xf32, #tpu.memory_space<vmem>>, %arg7: memref<2x544xf32, #tpu.memory_space<vmem>>) attributes {dimension_semantics = [#tpu.dimension_semantics<arbitrary>], iteration_bounds = array<i64: 1>, scalar_prefetch = 0 : i64, scratch_operands = 0 : i64, tpu.core_type = #tpu.core_type<tc>, window_params = [{pipeline_mode = #tpu.pipeline_mode<synchronous>, transform_indices = @transform_0, window_bounds = array<i64: 40, 512>}, {pipeline_mode = #tpu.pipeline_mode<synchronous>, transform_indices = @transform_1, window_bounds = array<i64: 32, 40>}, {pipeline_mode = #tpu.pipeline_mode<synchronous>, transform_indices = @transform_2, window_bounds = array<i64: 32, 1>}, {pipeline_mode = #tpu.pipeline_mode<synchronous>, transform_indices = @transform_3, window_bounds = array<i64: 512, 32>}, {pipeline_mode = #tpu.pipeline_mode<synchronous>, transform_indices = @transform_4, window_bounds = array<i64: 32, 544>}, {pipeline_mode = #tpu.pipeline_mode<synchronous>, transform_indices = @transform_5, window_bounds = array<i64: 1, 544>}, {pipeline_mode = #tpu.pipeline_mode<synchronous>, transform_indices = @transform_6, window_bounds = array<i64: 2, 544>}]} {
    %c0 = arith.constant 0 : index
    %c0_0 = arith.constant 0 : index
    %0 = vector.load %arg2[%c0, %c0_0] : memref<32x40xbf16, #tpu.memory_space<vmem>>, vector<32x40xbf16>
    %c0_1 = arith.constant 0 : index
    %c0_2 = arith.constant 0 : index
    %1 = vector.load %arg1[%c0_1, %c0_2] : memref<40x512xbf16, #tpu.memory_space<vmem>>, vector<40x512xbf16>
    %cst = arith.constant dense<0.000000e+00> : vector<32x512xf32>
    %2 = tpu.matmul %0, %1, %cst {dimension_numbers = #tpu.dot_dimension_numbers<[1], [0], [0], [1], [0, 0, 1, 1], [], []>} : vector<32x40xbf16>, vector<40x512xbf16>, vector<32x512xf32> -> vector<32x512xf32>
    %c0_3 = arith.constant 0 : index
    %c0_4 = arith.constant 0 : index
    %3 = vector.load %arg3[%c0_3, %c0_4] : memref<32x1xf32, #tpu.memory_space<vmem>>, vector<32x1xf32>
    %4 = vector.broadcast %3 : vector<32x1xf32> to vector<32x512xf32>
    %5 = arith.addf %2, %4 : vector<32x512xf32>
    %cst_5 = arith.constant 0.000000e+00 : f32
    %6 = vector.broadcast %cst_5 : f32 to vector<32x512xf32>
    %7 = arith.maximumf %5, %6 : vector<32x512xf32>
    %c0_6 = arith.constant 0 : index
    %c0_7 = arith.constant 0 : index
    %8 = vector.load %arg4[%c0_6, %c0_7] : memref<512x32xf32, #tpu.memory_space<vmem>>, vector<512x32xf32>
    %cst_8 = arith.constant dense<0.000000e+00> : vector<32x32xf32>
    %9 = tpu.matmul %7, %8, %cst_8 {dimension_numbers = #tpu.dot_dimension_numbers<[1], [0], [0], [1], [0, 0, 1, 1], [], []>} : vector<32x512xf32>, vector<512x32xf32>, vector<32x32xf32> -> vector<32x32xf32>
    %10 = tpu.transpose %9, [1, 0] : vector<32x32xf32> -> vector<32x32xf32>
    %11 = arith.truncf %10 : vector<32x32xf32> to vector<32x32xbf16>
    %c0_9 = arith.constant 0 : index
    %c0_10 = arith.constant 0 : index
    %12 = vector.load %arg5[%c0_9, %c0_10] : memref<32x544xbf16, #tpu.memory_space<vmem>>, vector<32x544xbf16>
    %cst_11 = arith.constant dense<0.000000e+00> : vector<32x544xf32>
    %13 = tpu.matmul %11, %12, %cst_11 {dimension_numbers = #tpu.dot_dimension_numbers<[1], [0], [0], [1], [0, 0, 1, 1], [], []>} : vector<32x32xbf16>, vector<32x544xbf16>, vector<32x544xf32> -> vector<32x544xf32>
    %c0_12 = arith.constant 0 : index
    %c0_13 = arith.constant 0 : index
    %14 = vector.load %arg6[%c0_12, %c0_13] : memref<1x544xf32, #tpu.memory_space<vmem>>, vector<1x544xf32>
    %15 = vector.broadcast %14 : vector<1x544xf32> to vector<32x544xf32>
    %16 = arith.addf %13, %15 : vector<32x544xf32>
    %17 = vector.extract_strided_slice %16 {offsets = [0, 0], sizes = [16, 544], strides = [1, 1]} : vector<32x544xf32> to vector<16x544xf32>
    %cst_14 = arith.constant dense<0.000000e+00> : vector<544xf32>
    %18 = vector.multi_reduction <add>, %17, %cst_14 [0] : vector<16x544xf32> to vector<544xf32>
    %19 = vector.shape_cast %18 : vector<544xf32> to vector<1x544xf32>
    %cst_15 = arith.constant 1.600000e+01 : f32
    %20 = vector.broadcast %cst_15 : f32 to vector<1x544xf32>
    %21 = arith.divf %19, %20 : vector<1x544xf32>
    %cst_16 = arith.constant dense<0xFF800000> : vector<544xf32>
    %22 = vector.multi_reduction <maximumf>, %17, %cst_16 [0] : vector<16x544xf32> to vector<544xf32>
    %23 = vector.shape_cast %22 : vector<544xf32> to vector<1x544xf32>
    %cst_17 = arith.constant 5.000000e-01 : f32
    %24 = vector.broadcast %cst_17 : f32 to vector<1x544xf32>
    %25 = arith.mulf %24, %23 : vector<1x544xf32>
    %26 = arith.addf %21, %25 : vector<1x544xf32>
    %27 = vector.extract_strided_slice %16 {offsets = [16, 0], sizes = [16, 544], strides = [1, 1]} : vector<32x544xf32> to vector<16x544xf32>
    %cst_18 = arith.constant dense<0.000000e+00> : vector<544xf32>
    %28 = vector.multi_reduction <add>, %27, %cst_18 [0] : vector<16x544xf32> to vector<544xf32>
    %29 = vector.shape_cast %28 : vector<544xf32> to vector<1x544xf32>
    %cst_19 = arith.constant 1.600000e+01 : f32
    %30 = vector.broadcast %cst_19 : f32 to vector<1x544xf32>
    %31 = arith.divf %29, %30 : vector<1x544xf32>
    %cst_20 = arith.constant dense<0xFF800000> : vector<544xf32>
    %32 = vector.multi_reduction <maximumf>, %27, %cst_20 [0] : vector<16x544xf32> to vector<544xf32>
    %33 = vector.shape_cast %32 : vector<544xf32> to vector<1x544xf32>
    %cst_21 = arith.constant 5.000000e-01 : f32
    %34 = vector.broadcast %cst_21 : f32 to vector<1x544xf32>
    %35 = arith.mulf %34, %33 : vector<1x544xf32>
    %36 = arith.addf %31, %35 : vector<1x544xf32>
    %37 = tpu.concatenate %26, %36 in 0 : vector<1x544xf32>, vector<1x544xf32> -> vector<2x544xf32>
    %c0_22 = arith.constant 0 : index
    %c0_23 = arith.constant 0 : index
    %38 = vector.load %arg7[%c0_22, %c0_23] : memref<2x544xf32, #tpu.memory_space<vmem>>, vector<2x544xf32>
    tpu.vector_store %arg7[%c0_22, %c0_23], %37 {strides = array<i32>} : memref<2x544xf32, #tpu.memory_space<vmem>>, vector<2x544xf32>,
    return
  }
  func.func @transform_0(%arg0: i32) -> (i32, i32) {
    %c0_i32 = arith.constant 0 : i32
    %c0_i32_0 = arith.constant 0 : i32
    %c0_i32_1 = arith.constant 0 : i32
    return %c0_i32, %c0_i32_0 : i32, i32
  }
  func.func @transform_1(%arg0: i32) -> (i32, i32) {
    %c0_i32 = arith.constant 0 : i32
    %c0_i32_0 = arith.constant 0 : i32
    %c0_i32_1 = arith.constant 0 : i32
    return %c0_i32, %c0_i32_0 : i32, i32
  }
  func.func @transform_2(%arg0: i32) -> (i32, i32) {
    %c0_i32 = arith.constant 0 : i32
    %c0_i32_0 = arith.constant 0 : i32
    %c0_i32_1 = arith.constant 0 : i32
    return %c0_i32, %c0_i32_0 : i32, i32
  }
  func.func @transform_3(%arg0: i32) -> (i32, i32) {
    %c0_i32 = arith.constant 0 : i32
    %c0_i32_0 = arith.constant 0 : i32
    %c0_i32_1 = arith.constant 0 : i32
    return %c0_i32, %c0_i32_0 : i32, i32
  }
  func.func @transform_4(%arg0: i32) -> (i32, i32) {
    %c0_i32 = arith.constant 0 : i32
    %c0_i32_0 = arith.constant 0 : i32
    %c0_i32_1 = arith.constant 0 : i32
    return %c0_i32, %c0_i32_0 : i32, i32
  }
  func.func @transform_5(%arg0: i32) -> (i32, i32) {
    %c0_i32 = arith.constant 0 : i32
    %c0_i32_0 = arith.constant 0 : i32
    %c0_i32_1 = arith.constant 0 : i32
    return %c0_i32, %c0_i32_0 : i32, i32
  }
  func.func @transform_6(%arg0: i32) -> (i32, i32) {
    %c0_i32 = arith.constant 0 : i32
    %c0_i32_0 = arith.constant 0 : i32
    %c0_i32_1 = arith.constant 0 : i32
    return %c0_i32, %c0_i32_0 : i32, i32
  }
}

</mosaic_0001>

<llo_original>
// kernel: sed_attn_cnn1_forward.1
$region0: #{sed_attn_cnn1_forward.1}
  #allocation0 [shape = 'u32[]', space=smem, size = 0x4, offset = 0x4, fixed_abs, tag = 'smem constant byte address 0x4 - core index']
  #allocation1 [shape = 'u32[144,128]{1,0:T(1,128)}', space=vmem, size = 0x12000, scoped, tag = 'internal scratch']
  %s0 = inlined_call_operand.vmem [shape: bf16[40,512], index: 0, kind: input, shape index: {}]
  %s1 = inlined_call_operand.vmem [shape: bf16[32,40], index: 1, kind: input, shape index: {}]
  %s2 = inlined_call_operand.vmem [shape: f32[32,1], index: 2, kind: input, shape index: {}]
  %s3 = inlined_call_operand.vmem [shape: f32[512,32], index: 3, kind: input, shape index: {}]
  %s4 = inlined_call_operand.vmem [shape: bf16[32,544], index: 4, kind: input, shape index: {}]
  %s5 = inlined_call_operand.vmem [shape: f32[1,544], index: 5, kind: input, shape index: {}]
  %s6 = inlined_call_operand.vmem [shape: f32[2,544], index: 6, kind: output, shape index: {}]
  %s7 = sld [smem:[#allocation0]]
  $region34: #{sed_attn_cnn1_forward.1} parent=0
    _
  %s9 = ssub.s32 1, %s7
  %s10 = scalar_select 0, %s9, %s7
  // Predicated region
  $region2: #{sed_attn_cnn1_forward.1} parent=0 // pred_check
    _
  $region3: #{sed_attn_cnn1_forward.1} parent=0 // pred_check_branch
    %12 = sbr.rel (0) target = $region5
  $region4: #{sed_attn_cnn1_forward.1} parent=0 // pred_region
    _
  $region5: #{sed_attn_cnn1_forward.1} parent=0 // pred_fallthru
    _
  // Predicated region
  $region6: #{sed_attn_cnn1_forward.1} parent=0 // pred_check
    _
  $region7: #{sed_attn_cnn1_forward.1} parent=0 // pred_check_branch
    %14 = sbr.rel (0) target = $region9
  $region8: #{sed_attn_cnn1_forward.1} parent=0 // pred_region
    _
  $region9: #{sed_attn_cnn1_forward.1} parent=0 // pred_fallthru
    _
  // Predicated region
  $region10: #{sed_attn_cnn1_forward.1} parent=0 // pred_check
    _
  $region11: #{sed_attn_cnn1_forward.1} parent=0 // pred_check_branch
    %16 = sbr.rel (0) target = $region13
  $region12: #{sed_attn_cnn1_forward.1} parent=0 // pred_region
    _
  $region13: #{sed_attn_cnn1_forward.1} parent=0 // pred_fallthru
    _
  // Predicated region
  $region14: #{sed_attn_cnn1_forward.1} parent=0 // pred_check
    _
  $region15: #{sed_attn_cnn1_forward.1} parent=0 // pred_check_branch
    %18 = sbr.rel (0) target = $region17
  $region16: #{sed_attn_cnn1_forward.1} parent=0 // pred_region
    _
  $region17: #{sed_attn_cnn1_forward.1} parent=0 // pred_fallthru
    _
  // Predicated region
  $region18: #{sed_attn_cnn1_forward.1} parent=0 // pred_check
    _
  $region19: #{sed_attn_cnn1_forward.1} parent=0 // pred_check_branch
    %20 = sbr.rel (0) target = $region21
  $region20: #{sed_attn_cnn1_forward.1} parent=0 // pred_region
    _
  $region21: #{sed_attn_cnn1_forward.1} parent=0 // pred_fallthru
    _
  // Predicated region
  $region22: #{sed_attn_cnn1_forward.1} parent=0 // pred_check
    _
  $region23: #{sed_attn_cnn1_forward.1} parent=0 // pred_check_branch
    %22 = sbr.rel (0) target = $region25
  $region24: #{sed_attn_cnn1_forward.1} parent=0 // pred_region
    _
  $region25: #{sed_attn_cnn1_forward.1} parent=0 // pred_fallthru
    _
  %v24 = vld [vmem:[%s1] sm:$0xf]
  %v25 = vld [vmem:[%s1 + $0x4] sm:$0xf]
  %v26 = vld [vmem:[%s1 + $0x8] sm:$0xf]
  %v27 = vld [vmem:[%s1 + $0xc] sm:$0xf]
  %v28 = vld [vmem:[%s0] sm:$0xff]
  %v29 = vld [vmem:[%s0 + $0x8] sm:$0xff]
  %v30 = vld [vmem:[%s0 + $0x10] sm:$0xff]
  %v31 = vld [vmem:[%s0 + $0x18] sm:$0xff]
  %v32 = vld [vmem:[%s0 + $0x20] sm:$0xff]
  %v33 = vld [vmem:[%s0 + $0x28] sm:$0xff]
  %v34 = vld [vmem:[%s0 + $0x30] sm:$0xff]
  %v35 = vld [vmem:[%s0 + $0x38] sm:$0xff]
  %v36 = vld [vmem:[%s0 + $0x40] sm:$0xff]
  %v37 = vld [vmem:[%s0 + $0x48] sm:$0xff]
  %v38 = vld [vmem:[%s2] sm:$0xff]
  %v39 = vld [vmem:[%s2 + $0x8] sm:$0xff]
  %v40 = vld [vmem:[%s2 + $0x10] sm:$0xff]
  %v41 = vld [vmem:[%s2 + $0x18] sm:$0xff]
  %43 = vset.pattern.permute.xlu0 0
  %44 = vperm.xlu0 %43, %v38
  %v45 = vpop.permute.xlu0 %44
  %48 = vset.pattern.permute.xlu0 0
  %49 = vperm.xlu0 %48, %v39
  %v50 = vpop.permute.xlu0 %49
  %53 = vset.pattern.permute.xlu0 0
  %54 = vperm.xlu0 %53, %v40
  %v55 = vpop.permute.xlu0 %54
  %58 = vset.pattern.permute.xlu0 0
  %59 = vperm.xlu0 %58, %v41
  %v60 = vpop.permute.xlu0 %59
  %v66 = vunpack.c.l.b16 %v24
  %v67 = vunpack.c.l.b16 %v25
  %v68 = vunpack.c.l.b16 %v26
  %v69 = vunpack.c.l.b16 %v27
  %v70 = vpack.c.b16 %v67, %v66
  %v71 = vpack.c.b16 %v69, %v68
  %v82 = vunpack.c.l.b16 %v28
  %v83 = vunpack.c.h.b16 %v28
  %v84 = vunpack.c.l.b16 %v29
  %v85 = vunpack.c.h.b16 %v29
  %v86 = vunpack.c.l.b16 %v30
  %v87 = vunpack.c.h.b16 %v30
  %v88 = vunpack.c.l.b16 %v31
  %v89 = vunpack.c.h.b16 %v31
  %v90 = vunpack.c.l.b16 %v32
  %v91 = vunpack.c.h.b16 %v32
  %v92 = vunpack.c.l.b16 %v33
  %v93 = vunpack.c.h.b16 %v33
  %v94 = vunpack.c.l.b16 %v34
  %v95 = vunpack.c.h.b16 %v34
  %v96 = vunpack.c.l.b16 %v35
  %v97 = vunpack.c.h.b16 %v35
  %v98 = vunpack.c.l.b16 %v36
  %v99 = vunpack.c.h.b16 %v36
  %v100 = vunpack.c.l.b16 %v37
  %v101 = vunpack.c.h.b16 %v37
  %v102 = vpack.c.b16 %v86, %v82
  %v103 = vpack.c.b16 %v87, %v83
  %v104 = vpack.c.b16 %v88, %v84
  %v105 = vpack.c.b16 %v89, %v85
  %v106 = vpack.c.b16 %v94, %v90
  %v107 = vpack.c.b16 %v95, %v91
  %v108 = vpack.c.b16 %v96, %v92
  %v109 = vpack.c.b16 %v97, %v93
  %v110 = vpack.c.b16 %v98, %v98
  %v111 = vpack.c.b16 %v99, %v99
  %v112 = vpack.c.b16 %v100, %v100
  %v113 = vpack.c.b16 %v101, %v101
  %vm122 = vcmask 326656
  %v124 = vsel %vm122, %v70, 0
  %v127 = vsel %vm122, %v71, 0
  %vm129 = vcmask 1043456
  %v131 = vsel %vm129, %v110, 0
  %v134 = vsel %vm129, %v111, 0
  %v137 = vsel %vm129, %v112, 0
  %v140 = vsel %vm129, %v113, 0
  %142 = vmatprep.subr.bf16.mxu0 %v103
  %143 = vmatpush1.bf16.msra.mxu0 %v102
  %144 = vmatprep.subr.bf16.mxu0 %v107
  %145 = vmatpush1.bf16.msra.mxu0 %v106
  %146 = vmatprep.subr.bf16.mxu0 %v134
  %147 = vmatpush1.bf16.msra.mxu0 %v131
  %148 = vmatprep.subr.bf16.mxu0 0
  %149 = vmatpush1.bf16.msra.mxu0 0
  %150 = vmatprep.subr.bf16.mxu0 0
  %151 = vmatpush1.bf16.msra.mxu0 0
  %152 = vmatprep.subr.bf16.mxu0 0
  %153 = vmatpush1.bf16.msra.mxu0 0
  %154 = vmatprep.subr.bf16.mxu0 0
  %155 = vmatpush1.bf16.msra.mxu0 0
  %156 = vmatprep.subr.bf16.mxu0 0
  %157 = vmatpush1.bf16.msra.mxu0 0
  %158 = vmatprep.subr.bf16.mxu0 0
  %159 = vmatpush1.bf16.msra.mxu0 0
  %160 = vmatprep.subr.bf16.mxu0 0
  %161 = vmatpush1.bf16.msra.mxu0 0
  %162 = vmatprep.subr.bf16.mxu0 0
  %163 = vmatpush1.bf16.msra.mxu0 0
  %164 = vmatprep.subr.bf16.mxu0 0
  %165 = vmatpush1.bf16.msra.mxu0 0
  %166 = vmatprep.subr.bf16.mxu0 0
  %167 = vmatpush1.bf16.msra.mxu0 0
  %168 = vmatprep.subr.bf16.mxu0 0
  %169 = vmatpush1.bf16.msra.mxu0 0
  %170 = vmatprep.subr.bf16.mxu0 0
  %171 = vmatpush1.bf16.msra.mxu0 0
  %172 = vmatprep.subr.bf16.mxu0 0
  %173 = vmatpush1.bf16.msra.mxu0 0
  %174 = vmatprep.mubr.bf16.mxu0 0
  %175 = vmatmul.mubr.bf16.gmra.mrb[0].mxu0 %v124
  %v176 = vpop.f32.mrb[0].mxu0
  %v177 = vadd.f32 %v45, %v176
  %v178 = vpop.f32.mrb[0].mxu0
  %v179 = vadd.f32 %v45, %v178
  %v180 = vpop.f32.mrb[0].mxu0
  %v181 = vadd.f32 %v50, %v180
  %v182 = vpop.f32.mrb[0].mxu0
  %v183 = vadd.f32 %v50, %v182
  %184 = vmatprep.mubr.bf16.mxu0 0
  %185 = vmatmul.mubr.bf16.gmra.mrb[0].mxu0 %v127
  %v186 = vpop.f32.mrb[0].mxu0
  %v187 = vadd.f32 %v55, %v186
  %v188 = vpop.f32.mrb[0].mxu0
  %v189 = vadd.f32 %v55, %v188
  %v190 = vpop.f32.mrb[0].mxu0
  %v191 = vadd.f32 %v60, %v190
  %v192 = vpop.f32.mrb[0].mxu0
  %v193 = vadd.f32 %v60, %v192
  %194 = vdwg.mxu0
  %195 = vmatprep.subr.bf16.mxu0 %v105
  %196 = vmatpush1.bf16.msra.mxu0 %v104
  %197 = vmatprep.subr.bf16.mxu0 %v109
  %198 = vmatpush1.bf16.msra.mxu0 %v108
  %199 = vmatprep.subr.bf16.mxu0 %v140
  %200 = vmatpush1.bf16.msra.mxu0 %v137
  %201 = vmatprep.subr.bf16.mxu0 0
  %202 = vmatpush1.bf16.msra.mxu0 0
  %203 = vmatprep.subr.bf16.mxu0 0
  %204 = vmatpush1.bf16.msra.mxu0 0
  %205 = vmatprep.subr.bf16.mxu0 0
  %206 = vmatpush1.bf16.msra.mxu0 0
  %207 = vmatprep.subr.bf16.mxu0 0
  %208 = vmatpush1.bf16.msra.mxu0 0
  %209 = vmatprep.subr.bf16.mxu0 0
  %210 = vmatpush1.bf16.msra.mxu0 0
  %211 = vmatprep.subr.bf16.mxu0 0
  %212 = vmatpush1.bf16.msra.mxu0 0
  %213 = vmatprep.subr.bf16.mxu0 0
  %214 = vmatpush1.bf16.msra.mxu0 0
  %215 = vmatprep.subr.bf16.mxu0 0
  %216 = vmatpush1.bf16.msra.mxu0 0
  %217 = vmatprep.subr.bf16.mxu0 0
  %218 = vmatpush1.bf16.msra.mxu0 0
  %219 = vmatprep.subr.bf16.mxu0 0
  %220 = vmatpush1.bf16.msra.mxu0 0
  %221 = vmatprep.subr.bf16.mxu0 0
  %222 = vmatpush1.bf16.msra.mxu0 0
  %223 = vmatprep.subr.bf16.mxu0 0
  %224 = vmatpush1.bf16.msra.mxu0 0
  %225 = vmatprep.subr.bf16.mxu0 0
  %226 = vmatpush1.bf16.msra.mxu0 0
  %227 = vmatprep.mubr.bf16.mxu0 0
  %228 = vmatmul.mubr.bf16.gmra.mrb[0].mxu0 %v124
  %v229 = vpop.f32.mrb[0].mxu0
  %v230 = vadd.f32 %v45, %v229
  %v231 = vpop.f32.mrb[0].mxu0
  %v232 = vadd.f32 %v45, %v231
  %v233 = vpop.f32.mrb[0].mxu0
  %v234 = vadd.f32 %v50, %v233
  %v235 = vpop.f32.mrb[0].mxu0
  %v236 = vadd.f32 %v50, %v235
  %237 = vmatprep.mubr.bf16.mxu0 0
  %238 = vmatmul.mubr.bf16.gmra.mrb[0].mxu0 %v127
  %v239 = vpop.f32.mrb[0].mxu0
  %v240 = vadd.f32 %v55, %v239
  %v241 = vpop.f32.mrb[0].mxu0
  %v242 = vadd.f32 %v55, %v241
  %v243 = vpop.f32.mrb[0].mxu0
  %v244 = vadd.f32 %v60, %v243
  %v245 = vpop.f32.mrb[0].mxu0
  %v246 = vadd.f32 %v60, %v245
  %247 = vdwg.mxu0
  %v248 = vmax.f32 %v177, 0.0
  %v249 = vmax.f32 %v179, 0.0
  %v250 = vmax.f32 %v230, 0.0
  %v251 = vmax.f32 %v232, 0.0
  %v252 = vmax.f32 %v181, 0.0
  %v253 = vmax.f32 %v183, 0.0
  %v254 = vmax.f32 %v234, 0.0
  %v255 = vmax.f32 %v236, 0.0
  %v256 = vmax.f32 %v187, 0.0
  %v257 = vmax.f32 %v189, 0.0
  %v258 = vmax.f32 %v240, 0.0
  %v259 = vmax.f32 %v242, 0.0
  %v260 = vmax.f32 %v191, 0.0
  %v261 = vmax.f32 %v193, 0.0
  %v262 = vmax.f32 %v244, 0.0
  %v263 = vmax.f32 %v246, 0.0
  %v264 = vld [vmem:[%s3] sm:$0xff]
  %v265 = vld [vmem:[%s3 + $0x8] sm:$0xff]
  %v266 = vld [vmem:[%s3 + $0x10] sm:$0xff]
  %v267 = vld [vmem:[%s3 + $0x18] sm:$0xff]
  %v268 = vld [vmem:[%s3 + $0x20] sm:$0xff]
  %v269 = vld [vmem:[%s3 + $0x28] sm:$0xff]
  %v270 = vld [vmem:[%s3 + $0x30] sm:$0xff]
  %v271 = vld [vmem:[%s3 + $0x38] sm:$0xff]
  %v272 = vld [vmem:[%s3 + $0x40] sm:$0xff]
  %v273 = vld [vmem:[%s3 + $0x48] sm:$0xff]
  %v274 = vld [vmem:[%s3 + $0x50] sm:$0xff]
  %v275 = vld [vmem:[%s3 + $0x58] sm:$0xff]
  %v276 = vld [vmem:[%s3 + $0x60] sm:$0xff]
  %v277 = vld [vmem:[%s3 + $0x68] sm:$0xff]
  %v278 = vld [vmem:[%s3 + $0x70] sm:$0xff]
  %v279 = vld [vmem:[%s3 + $0x78] sm:$0xff]
  %v280 = vld [vmem:[%s3 + $0x80] sm:$0xff]
  %v281 = vld [vmem:[%s3 + $0x88] sm:$0xff]
  %v282 = vld [vmem:[%s3 + $0x90] sm:$0xff]
  %v283 = vld [vmem:[%s3 + $0x98] sm:$0xff]
  %v284 = vld [vmem:[%s3 + $0xa0] sm:$0xff]
  %v285 = vld [vmem:[%s3 + $0xa8] sm:$0xff]
  %v286 = vld [vmem:[%s3 + $0xb0] sm:$0xff]
  %v287 = vld [vmem:[%s3 + $0xb8] sm:$0xff]
  %v288 = vld [vmem:[%s3 + $0xc0] sm:$0xff]
  %v289 = vld [vmem:[%s3 + $0xc8] sm:$0xff]
  %v290 = vld [vmem:[%s3 + $0xd0] sm:$0xff]
  %v291 = vld [vmem:[%s3 + $0xd8] sm:$0xff]
  %v292 = vld [vmem:[%s3 + $0xe0] sm:$0xff]
  %v293 = vld [vmem:[%s3 + $0xe8] sm:$0xff]
  %v294 = vld [vmem:[%s3 + $0xf0] sm:$0xff]
  %v295 = vld [vmem:[%s3 + $0xf8] sm:$0xff]
  %v296 = vld [vmem:[%s3 + $0x100] sm:$0xff]
  %v297 = vld [vmem:[%s3 + $0x108] sm:$0xff]
  %v298 = vld [vmem:[%s3 + $0x110] sm:$0xff]
  %v299 = vld [vmem:[%s3 + $0x118] sm:$0xff]
  %v300 = vld [vmem:[%s3 + $0x120] sm:$0xff]
  %v301 = vld [vmem:[%s3 + $0x128] sm:$0xff]
  %v302 = vld [vmem:[%s3 + $0x130] sm:$0xff]
  %v303 = vld [vmem:[%s3 + $0x138] sm:$0xff]
  %v304 = vld [vmem:[%s3 + $0x140] sm:$0xff]
  %v305 = vld [vmem:[%s3 + $0x148] sm:$0xff]
  %v306 = vld [vmem:[%s3 + $0x150] sm:$0xff]
  %v307 = vld [vmem:[%s3 + $0x158] sm:$0xff]
  %v308 = vld [vmem:[%s3 + $0x160] sm:$0xff]
  %v309 = vld [vmem:[%s3 + $0x168] sm:$0xff]
  %v310 = vld [vmem:[%s3 + $0x170] sm:$0xff]
  %v311 = vld [vmem:[%s3 + $0x178] sm:$0xff]
  %v312 = vld [vmem:[%s3 + $0x180] sm:$0xff]
  %v313 = vld [vmem:[%s3 + $0x188] sm:$0xff]
  %v314 = vld [vmem:[%s3 + $0x190] sm:$0xff]
  %v315 = vld [vmem:[%s3 + $0x198] sm:$0xff]
  %v316 = vld [vmem:[%s3 + $0x1a0] sm:$0xff]
  %v317 = vld [vmem:[%s3 + $0x1a8] sm:$0xff]
  %v318 = vld [vmem:[%s3 + $0x1b0] sm:$0xff]
  %v319 = vld [vmem:[%s3 + $0x1b8] sm:$0xff]
  %v320 = vld [vmem:[%s3 + $0x1c0] sm:$0xff]
  %v321 = vld [vmem:[%s3 + $0x1c8] sm:$0xff]
  %v322 = vld [vmem:[%s3 + $0x1d0] sm:$0xff]
  %v323 = vld [vmem:[%s3 + $0x1d8] sm:$0xff]
  %v324 = vld [vmem:[%s3 + $0x1e0] sm:$0xff]
  %v325 = vld [vmem:[%s3 + $0x1e8] sm:$0xff]
  %v326 = vld [vmem:[%s3 + $0x1f0] sm:$0xff]
  %v327 = vld [vmem:[%s3 + $0x1f8] sm:$0xff]
  %328 = vmatprep.subr.mxu0 0.0
  %329 = vmatpush1.msra.mxu0 %v264
  %330 = vmatprep.subr.mxu0 0.0
  %331 = vmatpush1.msra.mxu0 %v265
  %332 = vmatprep.subr.mxu0 0.0
  %333 = vmatpush1.msra.mxu0 %v266
  %334 = vmatprep.subr.mxu0 0.0
  %335 = vmatpush1.msra.mxu0 %v267
  %336 = vmatprep.subr.mxu0 0.0
  %337 = vmatpush1.msra.mxu0 %v268
  %338 = vmatprep.subr.mxu0 0.0
  %339 = vmatpush1.msra.mxu0 %v269
  %340 = vmatprep.subr.mxu0 0.0
  %341 = vmatpush1.msra.mxu0 %v270
  %342 = vmatprep.subr.mxu0 0.0
  %343 = vmatpush1.msra.mxu0 %v271
  %344 = vmatprep.subr.mxu0 0.0
  %345 = vmatpush1.msra.mxu0 %v272
  %346 = vmatprep.subr.mxu0 0.0
  %347 = vmatpush1.msra.mxu0 %v273
  %348 = vmatprep.subr.mxu0 0.0
  %349 = vmatpush1.msra.mxu0 %v274
  %350 = vmatprep.subr.mxu0 0.0
  %351 = vmatpush1.msra.mxu0 %v275
  %352 = vmatprep.subr.mxu0 0.0
  %353 = vmatpush1.msra.mxu0 %v276
  %354 = vmatprep.subr.mxu0 0.0
  %355 = vmatpush1.msra.mxu0 %v277
  %356 = vmatprep.subr.mxu0 0.0
  %357 = vmatpush1.msra.mxu0 %v278
  %358 = vmatprep.subr.mxu0 0.0
  %359 = vmatpush1.msra.mxu0 %v279
  %360 = vmatprep.subr.mxu0 0.0
  %361 = vmatpush1.msra.mxu0 %v280
  %362 = vmatprep.subr.mxu0 0.0
  %363 = vmatpush1.msra.mxu0 %v281
  %364 = vmatprep.subr.mxu0 0.0
  %365 = vmatpush1.msra.mxu0 %v282
  %366 = vmatprep.subr.mxu0 0.0
  %367 = vmatpush1.msra.mxu0 %v283
  %368 = vmatprep.subr.mxu0 0.0
  %369 = vmatpush1.msra.mxu0 %v284
  %370 = vmatprep.subr.mxu0 0.0
  %371 = vmatpush1.msra.mxu0 %v285
  %372 = vmatprep.subr.mxu0 0.0
  %373 = vmatpush1.msra.mxu0 %v286
  %374 = vmatprep.subr.mxu0 0.0
  %375 = vmatpush1.msra.mxu0 %v287
  %376 = vmatprep.subr.mxu0 0.0
  %377 = vmatpush1.msra.mxu0 %v288
  %378 = vmatprep.subr.mxu0 0.0
  %379 = vmatpush1.msra.mxu0 %v289
  %380 = vmatprep.subr.mxu0 0.0
  %381 = vmatpush1.msra.mxu0 %v290
  %382 = vmatprep.subr.mxu0 0.0
  %383 = vmatpush1.msra.mxu0 %v291
  %384 = vmatprep.subr.mxu0 0.0
  %385 = vmatpush1.msra.mxu0 %v292
  %386 = vmatprep.subr.mxu0 0.0
  %387 = vmatpush1.msra.mxu0 %v293
  %388 = vmatprep.subr.mxu0 0.0
  %389 = vmatpush1.msra.mxu0 %v294
  %390 = vmatprep.subr.mxu0 0.0
  %391 = vmatpush1.msra.mxu0 %v295
  %392 = vmatprep.mubr.f32.mxu0 %v249
  %393 = vmatmul.mubr.f32.gmra.mrb[0].mxu0 %v248
  %v394 = vpop.f32.mrb[0].mxu0
  %v395 = vadd.f32 0.0, %v394
  %v396 = vpop.f32.mrb[0].mxu0
  %397 = vmatprep.mubr.f32.mxu0 %v253
  %398 = vmatmul.mubr.f32.gmra.mrb[0].mxu0 %v252
  %v399 = vpop.f32.mrb[0].mxu0
  %v400 = vadd.f32 0.0, %v399
  %v401 = vpop.f32.mrb[0].mxu0
  %402 = vmatprep.mubr.f32.mxu0 %v257
  %403 = vmatmul.mubr.f32.gmra.mrb[0].mxu0 %v256
  %v404 = vpop.f32.mrb[0].mxu0
  %v405 = vadd.f32 0.0, %v404
  %v406 = vpop.f32.mrb[0].mxu0
  %407 = vmatprep.mubr.f32.mxu0 %v261
  %408 = vmatmul.mubr.f32.gmra.mrb[0].mxu0 %v260
  %v409 = vpop.f32.mrb[0].mxu0
  %v410 = vadd.f32 0.0, %v409
  %v411 = vpop.f32.mrb[0].mxu0
  %412 = vdwg.mxu0
  %413 = vmatprep.subr.mxu0 0.0
  %414 = vmatpush1.msra.mxu0 %v296
  %415 = vmatprep.subr.mxu0 0.0
  %416 = vmatpush1.msra.mxu0 %v297
  %417 = vmatprep.subr.mxu0 0.0
  %418 = vmatpush1.msra.mxu0 %v298
  %419 = vmatprep.subr.mxu0 0.0
  %420 = vmatpush1.msra.mxu0 %v299
  %421 = vmatprep.subr.mxu0 0.0
  %422 = vmatpush1.msra.mxu0 %v300
  %423 = vmatprep.subr.mxu0 0.0
  %424 = vmatpush1.msra.mxu0 %v301
  %425 = vmatprep.subr.mxu0 0.0
  %426 = vmatpush1.msra.mxu0 %v302
  %427 = vmatprep.subr.mxu0 0.0
  %428 = vmatpush1.msra.mxu0 %v303
  %429 = vmatprep.subr.mxu0 0.0
  %430 = vmatpush1.msra.mxu0 %v304
  %431 = vmatprep.subr.mxu0 0.0
  %432 = vmatpush1.msra.mxu0 %v305
  %433 = vmatprep.subr.mxu0 0.0
  %434 = vmatpush1.msra.mxu0 %v306
  %435 = vmatprep.subr.mxu0 0.0
  %436 = vmatpush1.msra.mxu0 %v307
  %437 = vmatprep.subr.mxu0 0.0
  %438 = vmatpush1.msra.mxu0 %v308
  %439 = vmatprep.subr.mxu0 0.0
  %440 = vmatpush1.msra.mxu0 %v309
  %441 = vmatprep.subr.mxu0 0.0
  %442 = vmatpush1.msra.mxu0 %v310
  %443 = vmatprep.subr.mxu0 0.0
  %444 = vmatpush1.msra.mxu0 %v311
  %445 = vmatprep.subr.mxu0 0.0
  %446 = vmatpush1.msra.mxu0 %v312
  %447 = vmatprep.subr.mxu0 0.0
  %448 = vmatpush1.msra.mxu0 %v313
  %449 = vmatprep.subr.mxu0 0.0
  %450 = vmatpush1.msra.mxu0 %v314
  %451 = vmatprep.subr.mxu0 0.0
  %452 = vmatpush1.msra.mxu0 %v315
  %453 = vmatprep.subr.mxu0 0.0
  %454 = vmatpush1.msra.mxu0 %v316
  %455 = vmatprep.subr.mxu0 0.0
  %456 = vmatpush1.msra.mxu0 %v317
  %457 = vmatprep.subr.mxu0 0.0
  %458 = vmatpush1.msra.mxu0 %v318
  %459 = vmatprep.subr.mxu0 0.0
  %460 = vmatpush1.msra.mxu0 %v319
  %461 = vmatprep.subr.mxu0 0.0
  %462 = vmatpush1.msra.mxu0 %v320
  %463 = vmatprep.subr.mxu0 0.0
  %464 = vmatpush1.msra.mxu0 %v321
  %465 = vmatprep.subr.mxu0 0.0
  %466 = vmatpush1.msra.mxu0 %v322
  %467 = vmatprep.subr.mxu0 0.0
  %468 = vmatpush1.msra.mxu0 %v323
  %469 = vmatprep.subr.mxu0 0.0
  %470 = vmatpush1.msra.mxu0 %v324
  %471 = vmatprep.subr.mxu0 0.0
  %472 = vmatpush1.msra.mxu0 %v325
  %473 = vmatprep.subr.mxu0 0.0
  %474 = vmatpush1.msra.mxu0 %v326
  %475 = vmatprep.subr.mxu0 0.0
  %476 = vmatpush1.msra.mxu0 %v327
  %477 = vmatprep.mubr.f32.mxu0 %v251
  %478 = vmatmul.mubr.f32.gmra.mrb[0].mxu0 %v250
  %v479 = vpop.f32.mrb[0].mxu0
  %v480 = vadd.f32 %v395, %v479
  %v481 = vpop.f32.mrb[0].mxu0
  %482 = vmatprep.mubr.f32.mxu0 %v255
  %483 = vmatmul.mubr.f32.gmra.mrb[0].mxu0 %v254
  %v484 = vpop.f32.mrb[0].mxu0
  %v485 = vadd.f32 %v400, %v484
  %v486 = vpop.f32.mrb[0].mxu0
  %487 = vmatprep.mubr.f32.mxu0 %v259
  %488 = vmatmul.mubr.f32.gmra.mrb[0].mxu0 %v258
  %v489 = vpop.f32.mrb[0].mxu0
  %v490 = vadd.f32 %v405, %v489
  %v491 = vpop.f32.mrb[0].mxu0
  %492 = vmatprep.mubr.f32.mxu0 %v263
  %493 = vmatmul.mubr.f32.gmra.mrb[0].mxu0 %v262
  %v494 = vpop.f32.mrb[0].mxu0
  %v495 = vadd.f32 %v410, %v494
  %v496 = vpop.f32.mrb[0].mxu0
  %497 = vdwg.mxu0
  %498 = vxpose.xlu0.b32.start [1/16] %v480, 128
  %499 = vxpose.xlu0.b32.cont [2/16] %v485, 128
  %500 = vxpose.xlu0.b32.cont [3/16] %v490, 128
  %501 = vxpose.xlu0.b32.cont [4/16] %v495, 128
  %502 = vxpose.xlu0.b32.cont [5/16] 0.0, 128
  %503 = vxpose.xlu0.b32.cont [6/16] 0.0, 128
  %504 = vxpose.xlu0.b32.cont [7/16] 0.0, 128
  %505 = vxpose.xlu0.b32.cont [8/16] 0.0, 128
  %506 = vxpose.xlu0.b32.cont [9/16] 0.0, 128
  %507 = vxpose.xlu0.b32.cont [10/16] 0.0, 128
  %508 = vxpose.xlu0.b32.cont [11/16] 0.0, 128
  %509 = vxpose.xlu0.b32.cont [12/16] 0.0, 128
  %510 = vxpose.xlu0.b32.cont [13/16] 0.0, 128
  %511 = vxpose.xlu0.b32.cont [14/16] 0.0, 128
  %512 = vxpose.xlu0.b32.cont [15/16] 0.0, 128
  %513 = vxpose.xlu0.b32.end [16/16] 0.0, 128
  %v514 = vpop.trf.xlu0
  %v515 = vpop.trf.xlu0
  %v516 = vpop.trf.xlu0
  %v517 = vpop.trf.xlu0
  %v518 = vpop.trf.xlu0
  %v519 = vpop.trf.xlu0
  %v520 = vpop.trf.xlu0
  %v521 = vpop.trf.xlu0
  %v522 = vpop.trf.xlu0
  %v523 = vpop.trf.xlu0
  %v524 = vpop.trf.xlu0
  %v525 = vpop.trf.xlu0
  %v526 = vpop.trf.xlu0
  %v527 = vpop.trf.xlu0
  %v528 = vpop.trf.xlu0
  %v529 = vpop.trf.xlu0
  %v530 = vpack.c.bf16 %v515, %v514
  %v531 = vpack.c.bf16 %v517, %v516
  %v532 = vld [vmem:[%s4] sm:$0xff]
  %v533 = vld [vmem:[%s4 + $0x8] sm:$0xff]
  %v534 = vld [vmem:[%s4 + $0x10] sm:$0xf]
  %v535 = vld [vmem:[%s4 + $0x14] sm:$0xff]
  %v536 = vld [vmem:[%s4 + $0x1c] sm:$0xff]
  %v537 = vld [vmem:[%s4 + $0x24] sm:$0xf]
  %v538 = vld [vmem:[%s4 + $0x28] sm:$0xff]
  %v539 = vld [vmem:[%s4 + $0x30] sm:$0xff]
  %v540 = vld [vmem:[%s4 + $0x38] sm:$0xf]
  %v541 = vld [vmem:[%s4 + $0x3c] sm:$0xff]
  %v542 = vld [vmem:[%s4 + $0x44] sm:$0xff]
  %v543 = vld [vmem:[%s4 + $0x4c] sm:$0xf]
  %v544 = vld [vmem:[%s5] sm:$0x1f]
  %v546 = vlaneseq
  %v547 = vshrl.u32 %v546, 7
  %v548 = vsub.s32 0, %v547
  %v549 = vrot.slane %v544, %v548
  %v550 = vlaneseq
  %v551 = vshrl.u32 %v550, 7
  %v552 = vsub.s32 1, %v551
  %v553 = vrot.slane %v544, %v552
  %v554 = vlaneseq
  %v555 = vshrl.u32 %v554, 7
  %v556 = vsub.s32 2, %v555
  %v557 = vrot.slane %v544, %v556
  %v558 = vlaneseq
  %v559 = vshrl.u32 %v558, 7
  %v560 = vsub.s32 3, %v559
  %v561 = vrot.slane %v544, %v560
  %v562 = vlaneseq
  %v563 = vshrl.u32 %v562, 7
  %v564 = vsub.s32 4, %v563
  %v565 = vrot.slane %v544, %v564
  %v583 = vunpack.c.l.b16 %v532
  %v584 = vunpack.c.h.b16 %v532
  %v585 = vunpack.c.l.b16 %v533
  %v586 = vunpack.c.h.b16 %v533
  %v587 = vunpack.c.l.b16 %v534
  %v588 = vunpack.c.l.b16 %v535
  %v589 = vunpack.c.h.b16 %v535
  %v590 = vunpack.c.l.b16 %v536
  %v591 = vunpack.c.h.b16 %v536
  %v592 = vunpack.c.l.b16 %v537
  %v593 = vunpack.c.l.b16 %v538
  %v594 = vunpack.c.h.b16 %v538
  %v595 = vunpack.c.l.b16 %v539
  %v596 = vunpack.c.h.b16 %v539
  %v597 = vunpack.c.l.b16 %v540
  %v598 = vunpack.c.l.b16 %v541
  %v599 = vunpack.c.h.b16 %v541
  %v600 = vunpack.c.l.b16 %v542
  %v601 = vunpack.c.h.b16 %v542
  %v602 = vunpack.c.l.b16 %v543
  %v603 = vpack.c.b16 %v588, %v583
  %v604 = vpack.c.b16 %v589, %v584
  %v605 = vpack.c.b16 %v590, %v585
  %v606 = vpack.c.b16 %v591, %v586
  %v607 = vpack.c.b16 %v592, %v587
  %v608 = vpack.c.b16 %v598, %v593
  %v609 = vpack.c.b16 %v599, %v594
  %v610 = vpack.c.b16 %v600, %v595
  %v611 = vpack.c.b16 %v601, %v596
  %v612 = vpack.c.b16 %v602, %v597
  %vm623 = vcmask 261120
  %v625 = vsel %vm623, %v530, 0
  %v628 = vsel %vm623, %v531, 0
  %630 = vmatprep.subr.bf16.mxu0 %v604
  %631 = vmatpush1.bf16.msra.mxu0 %v603
  %632 = vmatprep.subr.bf16.mxu0 %v609
  %633 = vmatpush1.bf16.msra.mxu0 %v608
  %634 = vmatprep.subr.bf16.mxu0 0
  %635 = vmatpush1.bf16.msra.mxu0 0
  %636 = vmatprep.subr.bf16.mxu0 0
  %637 = vmatpush1.bf16.msra.mxu0 0
  %638 = vmatprep.subr.bf16.mxu0 0
  %639 = vmatpush1.bf16.msra.mxu0 0
  %640 = vmatprep.subr.bf16.mxu0 0
  %641 = vmatpush1.bf16.msra.mxu0 0
  %642 = vmatprep.subr.bf16.mxu0 0
  %643 = vmatpush1.bf16.msra.mxu0 0
  %644 = vmatprep.subr.bf16.mxu0 0
  %645 = vmatpush1.bf16.msra.mxu0 0
  %646 = vmatprep.subr.bf16.mxu0 0
  %647 = vmatpush1.bf16.msra.mxu0 0
  %648 = vmatprep.subr.bf16.mxu0 0
  %649 = vmatpush1.bf16.msra.mxu0 0
  %650 = vmatprep.subr.bf16.mxu0 0
  %651 = vmatpush1.bf16.msra.mxu0 0
  %652 = vmatprep.subr.bf16.mxu0 0
  %653 = vmatpush1.bf16.msra.mxu0 0
  %654 = vmatprep.subr.bf16.mxu0 0
  %655 = vmatpush1.bf16.msra.mxu0 0
  %656 = vmatprep.subr.bf16.mxu0 0
  %657 = vmatpush1.bf16.msra.mxu0 0
  %658 = vmatprep.subr.bf16.mxu0 0
  %659 = vmatpush1.bf16.msra.mxu0 0
  %660 = vmatprep.subr.bf16.mxu0 0
  %661 = vmatpush1.bf16.msra.mxu0 0
  %662 = vmatprep.mubr.bf16.mxu0 0
  %663 = vmatmul.mubr.bf16.gmra.mrb[0].mxu0 %v625
  %v664 = vpop.f32.mrb[0].mxu0
  %v665 = vadd.f32 %v549, %v664
  %v666 = vpop.f32.mrb[0].mxu0
  %v667 = vadd.f32 %v553, %v666
  %v668 = vpop.f32.mrb[0].mxu0
  %v669 = vadd.f32 %v549, %v668
  %v670 = vpop.f32.mrb[0].mxu0
  %v671 = vadd.f32 %v553, %v670
  %672 = vmatprep.mubr.bf16.mxu0 0
  %673 = vmatmul.mubr.bf16.gmra.mrb[0].mxu0 %v628
  %v674 = vpop.f32.mrb[0].mxu0
  %v675 = vadd.f32 %v549, %v674
  %v676 = vpop.f32.mrb[0].mxu0
  %v677 = vadd.f32 %v553, %v676
  %v678 = vpop.f32.mrb[0].mxu0
  %v679 = vadd.f32 %v549, %v678
  %v680 = vpop.f32.mrb[0].mxu0
  %v681 = vadd.f32 %v553, %v680
  %682 = vdwg.mxu0
  %683 = vmatprep.subr.bf16.mxu0 %v606
  %684 = vmatpush1.bf16.msra.mxu0 %v605
  %685 = vmatprep.subr.bf16.mxu0 %v611
  %686 = vmatpush1.bf16.msra.mxu0 %v610
  %687 = vmatprep.subr.bf16.mxu0 0
  %688 = vmatpush1.bf16.msra.mxu0 0
  %689 = vmatprep.subr.bf16.mxu0 0
  %690 = vmatpush1.bf16.msra.mxu0 0
  %691 = vmatprep.subr.bf16.mxu0 0
  %692 = vmatpush1.bf16.msra.mxu0 0
  %693 = vmatprep.subr.bf16.mxu0 0
  %694 = vmatpush1.bf16.msra.mxu0 0
  %695 = vmatprep.subr.bf16.mxu0 0
  %696 = vmatpush1.bf16.msra.mxu0 0
  %697 = vmatprep.subr.bf16.mxu0 0
  %698 = vmatpush1.bf16.msra.mxu0 0
  %699 = vmatprep.subr.bf16.mxu0 0
  %700 = vmatpush1.bf16.msra.mxu0 0
  %701 = vmatprep.subr.bf16.mxu0 0
  %702 = vmatpush1.bf16.msra.mxu0 0
  %703 = vmatprep.subr.bf16.mxu0 0
  %704 = vmatpush1.bf16.msra.mxu0 0
  %705 = vmatprep.subr.bf16.mxu0 0
  %706 = vmatpush1.bf16.msra.mxu0 0
  %707 = vmatprep.subr.bf16.mxu0 0
  %708 = vmatpush1.bf16.msra.mxu0 0
  %709 = vmatprep.subr.bf16.mxu0 0
  %710 = vmatpush1.bf16.msra.mxu0 0
  %711 = vmatprep.subr.bf16.mxu0 0
  %712 = vmatpush1.bf16.msra.mxu0 0
  %713 = vmatprep.subr.bf16.mxu0 0
  %714 = vmatpush1.bf16.msra.mxu0 0
  %715 = vmatprep.mubr.bf16.mxu0 0
  %716 = vmatmul.mubr.bf16.gmra.mrb[0].mxu0 %v625
  %v717 = vpop.f32.mrb[0].mxu0
  %v718 = vadd.f32 %v557, %v717
  %v719 = vpop.f32.mrb[0].mxu0
  %v720 = vadd.f32 %v561, %v719
  %v721 = vpop.f32.mrb[0].mxu0
  %v722 = vadd.f32 %v557, %v721
  %v723 = vpop.f32.mrb[0].mxu0
  %v724 = vadd.f32 %v561, %v723
  %725 = vmatprep.mubr.bf16.mxu0 0
  %726 = vmatmul.mubr.bf16.gmra.mrb[0].mxu0 %v628
  %v727 = vpop.f32.mrb[0].mxu0
  %v728 = vadd.f32 %v557, %v727
  %v729 = vpop.f32.mrb[0].mxu0
  %v730 = vadd.f32 %v561, %v729
  %v731 = vpop.f32.mrb[0].mxu0
  %v732 = vadd.f32 %v557, %v731
  %v733 = vpop.f32.mrb[0].mxu0
  %v734 = vadd.f32 %v561, %v733
  %735 = vdwg.mxu0
  %736 = vmatprep.subr.bf16.mxu0 0
  %737 = vmatpush1.bf16.msra.mxu0 %v607
  %738 = vmatprep.subr.bf16.mxu0 0
  %739 = vmatpush1.bf16.msra.mxu0 %v612
  %740 = vmatprep.subr.bf16.mxu0 0
  %741 = vmatpush1.bf16.msra.mxu0 0
  %742 = vmatprep.subr.bf16.mxu0 0
  %743 = vmatpush1.bf16.msra.mxu0 0
  %744 = vmatprep.subr.bf16.mxu0 0
  %745 = vmatpush1.bf16.msra.mxu0 0
  %746 = vmatprep.subr.bf16.mxu0 0
  %747 = vmatpush1.bf16.msra.mxu0 0
  %748 = vmatprep.subr.bf16.mxu0 0
  %749 = vmatpush1.bf16.msra.mxu0 0
  %750 = vmatprep.subr.bf16.mxu0 0
  %751 = vmatpush1.bf16.msra.mxu0 0
  %752 = vmatprep.subr.bf16.mxu0 0
  %753 = vmatpush1.bf16.msra.mxu0 0
  %754 = vmatprep.subr.bf16.mxu0 0
  %755 = vmatpush1.bf16.msra.mxu0 0
  %756 = vmatprep.subr.bf16.mxu0 0
  %757 = vmatpush1.bf16.msra.mxu0 0
  %758 = vmatprep.subr.bf16.mxu0 0
  %759 = vmatpush1.bf16.msra.mxu0 0
  %760 = vmatprep.subr.bf16.mxu0 0
  %761 = vmatpush1.bf16.msra.mxu0 0
  %762 = vmatprep.subr.bf16.mxu0 0
  %763 = vmatpush1.bf16.msra.mxu0 0
  %764 = vmatprep.subr.bf16.mxu0 0
  %765 = vmatpush1.bf16.msra.mxu0 0
  %766 = vmatprep.subr.bf16.mxu0 0
  %767 = vmatpush1.bf16.msra.mxu0 0
  %768 = vmatprep.mubr.bf16.mxu0 0
  %769 = vmatmul.mubr.bf16.gmra.mrb[0].mxu0 %v625
  %v770 = vpop.f32.mrb[0].mxu0
  %v771 = vadd.f32 %v565, %v770
  %v772 = vpop.f32.mrb[0].mxu0
  %v773 = vpop.f32.mrb[0].mxu0
  %v774 = vadd.f32 %v565, %v773
  %v775 = vpop.f32.mrb[0].mxu0
  %776 = vmatprep.mubr.bf16.mxu0 0
  %777 = vmatmul.mubr.bf16.gmra.mrb[0].mxu0 %v628
  %v778 = vpop.f32.mrb[0].mxu0
  %v779 = vadd.f32 %v565, %v778
  %v780 = vpop.f32.mrb[0].mxu0
  %v781 = vpop.f32.mrb[0].mxu0
  %v782 = vadd.f32 %v565, %v781
  %v783 = vpop.f32.mrb[0].mxu0
  %784 = vdwg.mxu0
  %v785 = vadd.f32 %v665, %v669
  %v786 = vrot.slane %v785, 4
  %v787 = vadd.f32 %v785, %v786
  %v788 = vrot.slane %v787, 2
  %v789 = vadd.f32 %v787, %v788
  %v790 = vrot.slane %v789, 1
  %v791 = vadd.f32 %v789, %v790
  %v792 = vadd.f32 %v667, %v671
  %v793 = vrot.slane %v792, 4
  %v794 = vadd.f32 %v792, %v793
  %v795 = vrot.slane %v794, 2
  %v796 = vadd.f32 %v794, %v795
  %v797 = vrot.slane %v796, 1
  %v798 = vadd.f32 %v796, %v797
  %v799 = vadd.f32 %v718, %v722
  %v800 = vrot.slane %v799, 4
  %v801 = vadd.f32 %v799, %v800
  %v802 = vrot.slane %v801, 2
  %v803 = vadd.f32 %v801, %v802
  %v804 = vrot.slane %v803, 1
  %v805 = vadd.f32 %v803, %v804
  %v806 = vadd.f32 %v720, %v724
  %v807 = vrot.slane %v806, 4
  %v808 = vadd.f32 %v806, %v807
  %v809 = vrot.slane %v808, 2
  %v810 = vadd.f32 %v808, %v809
  %v811 = vrot.slane %v810, 1
  %v812 = vadd.f32 %v810, %v811
  %v813 = vsel %vm623, %v771, 0.0
  %v814 = vsel %vm623, %v774, 0.0
  %v815 = vadd.f32 %v813, %v814
  %v816 = vrot.slane %v815, 4
  %v817 = vadd.f32 %v815, %v816
  %v818 = vrot.slane %v817, 2
  %v819 = vadd.f32 %v817, %v818
  %v820 = vrot.slane %v819, 1
  %v821 = vadd.f32 %v819, %v820
  %v822 = vrcp.pop 16.0
  %v823 = vmul.f32 %v791, %v822
  %v824 = vmul.f32 %v798, %v822
  %v825 = vmul.f32 %v805, %v822
  %v826 = vmul.f32 %v812, %v822
  %v827 = vmul.f32 %v821, %v822
  %v828 = vmax.f32 %v665, %v669
  %v829 = vrot.slane %v828, 4
  %v830 = vmax.f32 %v828, %v829
  %v831 = vrot.slane %v830, 2
  %v832 = vmax.f32 %v830, %v831
  %v833 = vrot.slane %v832, 1
  %v834 = vmax.f32 %v832, %v833
  %v835 = vmax.f32 %v667, %v671
  %v836 = vrot.slane %v835, 4
  %v837 = vmax.f32 %v835, %v836
  %v838 = vrot.slane %v837, 2
  %v839 = vmax.f32 %v837, %v838
  %v840 = vrot.slane %v839, 1
  %v841 = vmax.f32 %v839, %v840
  %v842 = vmax.f32 %v718, %v722
  %v843 = vrot.slane %v842, 4
  %v844 = vmax.f32 %v842, %v843
  %v845 = vrot.slane %v844, 2
  %v846 = vmax.f32 %v844, %v845
  %v847 = vrot.slane %v846, 1
  %v848 = vmax.f32 %v846, %v847
  %v849 = vmax.f32 %v720, %v724
  %v850 = vrot.slane %v849, 4
  %v851 = vmax.f32 %v849, %v850
  %v852 = vrot.slane %v851, 2
  %v853 = vmax.f32 %v851, %v852
  %v854 = vrot.slane %v853, 1
  %v855 = vmax.f32 %v853, %v854
  %v856 = vsel %vm623, %v771, -inf
  %v857 = vsel %vm623, %v774, -inf
  %v858 = vmax.f32 %v856, %v857
  %v859 = vrot.slane %v858, 4
  %v860 = vmax.f32 %v858, %v859
  %v861 = vrot.slane %v860, 2
  %v862 = vmax.f32 %v860, %v861
  %v863 = vrot.slane %v862, 1
  %v864 = vmax.f32 %v862, %v863
  %v865 = vmul.f32 %v834, 0.5
  %v866 = vmul.f32 %v841, 0.5
  %v867 = vmul.f32 %v848, 0.5
  %v868 = vmul.f32 %v855, 0.5
  %v869 = vmul.f32 %v864, 0.5
  %v870 = vadd.f32 %v823, %v865
  %v871 = vadd.f32 %v824, %v866
  %v872 = vadd.f32 %v825, %v867
  %v873 = vadd.f32 %v826, %v868
  %v874 = vadd.f32 %v827, %v869
  %v875 = vadd.f32 %v675, %v679
  %v876 = vrot.slane %v875, 4
  %v877 = vadd.f32 %v875, %v876
  %v878 = vrot.slane %v877, 2
  %v879 = vadd.f32 %v877, %v878
  %v880 = vrot.slane %v879, 1
  %v881 = vadd.f32 %v879, %v880
  %v882 = vadd.f32 %v677, %v681
  %v883 = vrot.slane %v882, 4
  %v884 = vadd.f32 %v882, %v883
  %v885 = vrot.slane %v884, 2
  %v886 = vadd.f32 %v884, %v885
  %v887 = vrot.slane %v886, 1
  %v888 = vadd.f32 %v886, %v887
  %v889 = vadd.f32 %v728, %v732
  %v890 = vrot.slane %v889, 4
  %v891 = vadd.f32 %v889, %v890
  %v892 = vrot.slane %v891, 2
  %v893 = vadd.f32 %v891, %v892
  %v894 = vrot.slane %v893, 1
  %v895 = vadd.f32 %v893, %v894
  %v896 = vadd.f32 %v730, %v734
  %v897 = vrot.slane %v896, 4
  %v898 = vadd.f32 %v896, %v897
  %v899 = vrot.slane %v898, 2
  %v900 = vadd.f32 %v898, %v899
  %v901 = vrot.slane %v900, 1
  %v902 = vadd.f32 %v900, %v901
  %v903 = vsel %vm623, %v779, 0.0
  %v904 = vsel %vm623, %v782, 0.0
  %v905 = vadd.f32 %v903, %v904
  %v906 = vrot.slane %v905, 4
  %v907 = vadd.f32 %v905, %v906
  %v908 = vrot.slane %v907, 2
  %v909 = vadd.f32 %v907, %v908
  %v910 = vrot.slane %v909, 1
  %v911 = vadd.f32 %v909, %v910
  %v912 = vmul.f32 %v881, %v822
  %v913 = vmul.f32 %v888, %v822
  %v914 = vmul.f32 %v895, %v822
  %v915 = vmul.f32 %v902, %v822
  %v916 = vmul.f32 %v911, %v822
  %v917 = vmax.f32 %v675, %v679
  %v918 = vrot.slane %v917, 4
  %v919 = vmax.f32 %v917, %v918
  %v920 = vrot.slane %v919, 2
  %v921 = vmax.f32 %v919, %v920
  %v922 = vrot.slane %v921, 1
  %v923 = vmax.f32 %v921, %v922
  %v924 = vmax.f32 %v677, %v681
  %v925 = vrot.slane %v924, 4
  %v926 = vmax.f32 %v924, %v925
  %v927 = vrot.slane %v926, 2
  %v928 = vmax.f32 %v926, %v927
  %v929 = vrot.slane %v928, 1
  %v930 = vmax.f32 %v928, %v929
  %v931 = vmax.f32 %v728, %v732
  %v932 = vrot.slane %v931, 4
  %v933 = vmax.f32 %v931, %v932
  %v934 = vrot.slane %v933, 2
  %v935 = vmax.f32 %v933, %v934
  %v936 = vrot.slane %v935, 1
  %v937 = vmax.f32 %v935, %v936
  %v938 = vmax.f32 %v730, %v734
  %v939 = vrot.slane %v938, 4
  %v940 = vmax.f32 %v938, %v939
  %v941 = vrot.slane %v940, 2
  %v942 = vmax.f32 %v940, %v941
  %v943 = vrot.slane %v942, 1
  %v944 = vmax.f32 %v942, %v943
  %v945 = vsel %vm623, %v779, -inf
  %v946 = vsel %vm623, %v782, -inf
  %v947 = vmax.f32 %v945, %v946
  %v948 = vrot.slane %v947, 4
  %v949 = vmax.f32 %v947, %v948
  %v950 = vrot.slane %v949, 2
  %v951 = vmax.f32 %v949, %v950
  %v952 = vrot.slane %v951, 1
  %v953 = vmax.f32 %v951, %v952
  %v954 = vmul.f32 %v923, 0.5
  %v955 = vmul.f32 %v930, 0.5
  %v956 = vmul.f32 %v937, 0.5
  %v957 = vmul.f32 %v944, 0.5
  %v958 = vmul.f32 %v953, 0.5
  %v959 = vadd.f32 %v912, %v954
  %v960 = vadd.f32 %v913, %v955
  %v961 = vadd.f32 %v914, %v956
  %v962 = vadd.f32 %v915, %v957
  %v963 = vadd.f32 %v916, %v958
  %vm964 = vcmask 1040384
  %v965 = vsel %vm964, %v870, %v959
  %v966 = vsel %vm964, %v871, %v960
  %v967 = vsel %vm964, %v872, %v961
  %v968 = vsel %vm964, %v873, %v962
  %v969 = vsel %vm964, %v874, %v963
  %v975 = vcombine.low %v965, %v966
  %v976 = vcombine.low %v967, %v968
  %v978 = vunpack.c.l.s4 1983009808
  %v979 = vunpack.c.0.s8 %v978
  %v980 = vlaneseq
  %v981 = vshrl.u32 %v980, 7
  %v982 = vsub.s32 %v979, %v981
  %v983 = vrot.slane %v975, %v982
  %v985 = vunpack.c.l.s4 1983009808
  %v986 = vunpack.c.0.s8 %v985
  %v987 = vlaneseq
  %v988 = vshrl.u32 %v987, 7
  %v989 = vsub.s32 %v986, %v988
  %v990 = vrot.slane %v976, %v989
  %v991 = vcombine.low %v983, %v990
  %v993 = vunpack.c.l.s4 1983009808
  %v994 = vunpack.c.0.s8 %v993
  %v995 = vlaneseq
  %v996 = vshrl.u32 %v995, 7
  %v997 = vsub.s32 %v994, %v996
  %v998 = vrot.slane %v969, %v997
  %1001 = vst [vmem:[%s6] sm:$0xff] %v991
  %vm1002 = vcmask 254976
  %1003 = vst.msk [vmem:[%s6 + $0x8] sm:$0x3] %vm1002, %v998
  // Predicated region
  $region26: #{sed_attn_cnn1_forward.1} parent=0 // pred_check
    _
  $region27: #{sed_attn_cnn1_forward.1} parent=0 // pred_check_branch
    %1005 = sbr.rel (0) target = $region29
  $region28: #{sed_attn_cnn1_forward.1} parent=0 // pred_region
    _
  $region29: #{sed_attn_cnn1_forward.1} parent=0 // pred_fallthru
    _
  // Predicated region
  $region30: #{sed_attn_cnn1_forward.1} parent=0 // pred_check
    _
  $region31: #{sed_attn_cnn1_forward.1} parent=0 // pred_check_branch
    %1007 = sbr.rel (0) target = $region33
  $region32: #{sed_attn_cnn1_forward.1} parent=0 // pred_region
    _
  $region33: #{sed_attn_cnn1_forward.1} parent=0 // pred_fallthru
    _

</llo_original>
